<compile_context>
chip_gen: v6e
topology: v6e:2x2x1
jax: 0.10.0
libtpu: 0.0.40
codegen_flags: <defaults>
</compile_context>

<pallas_src>
import functools

import jax
import jax.numpy as jnp
from jax.experimental import pallas as pl
from jax.experimental.pallas import tpu as pltpu

# ---- hyperparameters implied by the module -------------------------------
HIDDEN_DIMS = 32                     # p.hidden_dims
MAX_LEGS = 4                         # settings.max_legs
MAX_LINKS = 3                        # settings.max_links
ACTION_DIM = MAX_LEGS * MAX_LINKS    # 12
STATE_FEATS = 126
LEG_FEATS = 12
IN_FEATS = STATE_FEATS + LEG_FEATS   # 138
HEAD_DIM = 2 * ACTION_DIM            # 24 (mean | logstd fused)


def _round_up(n, m):
    return ((n + m - 1) // m) * m


# ---- Pallas kernel: fused MLP over one batch tile -------------------------
def policy_kernel(s_ref, l_ref, w1s_ref, w1l_ref, b1_ref,
                  w2_ref, b2_ref, wh_ref, bh_ref, out_ref):
    # First layer: split matmul replaces the materialized concat.
    h1 = (jnp.dot(s_ref[...], w1s_ref[...], preferred_element_type=jnp.float32)
          + jnp.dot(l_ref[...], w1l_ref[...], preferred_element_type=jnp.float32)
          + b1_ref[...])
    h1 = jnp.maximum(h1, 0.0)                                       # ReLU
    h2 = jnp.dot(h1, w2_ref[...], preferred_element_type=jnp.float32) + b2_ref[...]
    h2 = jnp.maximum(h2, 0.0)                                       # ReLU
    # Fused heads: (TILE_B, 24) = [mean | logstd]
    out = jnp.dot(h2, wh_ref[...], preferred_element_type=jnp.float32) + bh_ref[...]
    out_ref[...] = out.astype(out_ref.dtype)


@functools.partial(jax.jit, static_argnames=("tile_b",))
def policy_forward(leg_starts, states, params, *, tile_b=512):
    """leg_starts: (B, L1, L2), states: (B, S1, S2) -> (mean, logstd)."""
    B = states.shape[0]
    states_flat = states.reshape(B, -1).astype(jnp.float32)          # (B, 126)
    legs_flat = leg_starts.reshape(B, -1).astype(jnp.float32)        # (B, 12)

    w1s, w1l, b1, w2, b2, wh, bh = params

    # Batch tiling: pad B up to a multiple of the tile so every block is full.
    tile_b = max(8, min(tile_b, _round_up(B, 8)))                    # static int
    b_pad = _round_up(B, tile_b)
    if b_pad != B:
        pad = b_pad - B
        states_flat = jnp.pad(states_flat, ((0, pad), (0, 0)))
        legs_flat = jnp.pad(legs_flat, ((0, pad), (0, 0)))

    grid = (b_pad // tile_b,)

    batch_spec = lambda feats: pl.BlockSpec((tile_b, feats), lambda i: (i, 0))
    const_spec = lambda r, c: pl.BlockSpec((r, c), lambda i: (0, 0))

    cost = pl.CostEstimate(
        flops=2 * b_pad * (IN_FEATS * HIDDEN_DIMS
                           + HIDDEN_DIMS * HIDDEN_DIMS
                           + HIDDEN_DIMS * HEAD_DIM),
        transcendentals=0,
        bytes_accessed=4 * (b_pad * (IN_FEATS + HEAD_DIM)
                            + IN_FEATS * HIDDEN_DIMS
                            + HIDDEN_DIMS * HIDDEN_DIMS
                            + HIDDEN_DIMS * HEAD_DIM),
    )

    out = pl.pallas_call(
        policy_kernel,
        out_shape=jax.ShapeDtypeStruct((b_pad, HEAD_DIM), jnp.float32),
        grid=grid,
        in_specs=[
            batch_spec(STATE_FEATS),                    # states tile
            batch_spec(LEG_FEATS),                      # leg_starts tile
            const_spec(STATE_FEATS, HIDDEN_DIMS),       # w1s
            const_spec(LEG_FEATS, HIDDEN_DIMS),         # w1l
            const_spec(1, HIDDEN_DIMS),                 # b1
            const_spec(HIDDEN_DIMS, HIDDEN_DIMS),       # w2
            const_spec(1, HIDDEN_DIMS),                 # b2
            const_spec(HIDDEN_DIMS, HEAD_DIM),          # wh (wa|wl)
            const_spec(1, HEAD_DIM),                    # bh (ba|bl)
        ],
        out_specs=pl.BlockSpec((tile_b, HEAD_DIM), lambda i: (i, 0)),
        compiler_params=pltpu.CompilerParams(
            dimension_semantics=("parallel",)),
        cost_estimate=cost,
    )(states_flat, legs_flat, w1s, w1l, b1, w2, b2, wh, bh)

    out = out[:B]
    mean = out[:, :ACTION_DIM]
    logstd = out[:, ACTION_DIM:]
    return mean, logstd


# ---- deterministic parameter init (mirrors Policy.init_weights) ----------
def orthogonal(key, shape, gain):
    """Orthogonal init (like nn.init.orthogonal_) for a (out, in) matrix."""
    rows, cols = shape
    n = max(rows, cols)
    a = jax.random.normal(key, (n, n), dtype=jnp.float32)
    q, r = jnp.linalg.qr(a)
    d = jnp.diag(r)
    q = q * jnp.where(d == 0.0, 1.0, jnp.sign(d))    # proper Haar sample
    return gain * q[:rows, :cols]


def init_params(key):
    keys = jax.random.split(key, 4)
    tanh_gain = 5.0 / 3.0                # nn.init.calculate_gain('tanh')
    # fc layers: orthogonal weight (tanh gain), zero bias (stored transposed)
    w1 = orthogonal(keys[0], (HIDDEN_DIMS, IN_FEATS), tanh_gain).T   # (138, H)
    w1s = w1[:STATE_FEATS]                                           # (126, H)
    w1l = w1[STATE_FEATS:]                                           # (12, H)
    b1 = jnp.zeros((1, HIDDEN_DIMS), jnp.float32)
    w2 = orthogonal(keys[1], (HIDDEN_DIMS, HIDDEN_DIMS), tanh_gain).T  # (H, H)
    b2 = jnp.zeros((1, HIDDEN_DIMS), jnp.float32)
    # heads: PyTorch default Linear init (uniform +/- 1/sqrt(fan_in)), fused
    bound = 1.0 / jnp.sqrt(jnp.float32(HIDDEN_DIMS))
    wa = jax.random.uniform(keys[2], (HIDDEN_DIMS, ACTION_DIM),
                            minval=-bound, maxval=bound, dtype=jnp.float32)
    wl = jax.random.uniform(keys[3], (HIDDEN_DIMS, ACTION_DIM),
                            minval=-bound, maxval=bound, dtype=jnp.float32)
    wh = jnp.concatenate([wa, wl], axis=1)                           # (H, 24)
    bh = jnp.zeros((1, HEAD_DIM), jnp.float32)
    return (w1s, w1l, b1, w2, b2, wh, bh)


if __name__ == "__main__":
    key = jax.random.PRNGKey(0)
    k_states, k_legs, k_params = jax.random.split(key, 3)

    B = 2
    # states flattens to 126 features (14 x 9); leg_starts to 12 (4 x 3)
    states = jax.random.normal(k_states, (B, 14, 9), dtype=jnp.float32)
    leg_starts = jax.random.normal(k_legs, (B, 4, 3), dtype=jnp.float32)

    params = init_params(k_params)

    mean, logstd = policy_forward(leg_starts, states, params)
    jax.block_until_ready((mean, logstd))

    # reference check in plain JAX (against the original concat formulation)
    w1s, w1l, b1, w2, b2, wh, bh = params
    x = jnp.concatenate([states.reshape(B, -1), leg_starts.reshape(B, -1)], axis=1)
    w1_full = jnp.concatenate([w1s, w1l], axis=0)                    # (138, H)
    h = jnp.maximum(x @ w1_full + b1, 0.0)
    h = jnp.maximum(h @ w2 + b2, 0.0)
    heads = h @ wh + bh
    ref_mean = heads[:, :ACTION_DIM]
    ref_logstd = heads[:, ACTION_DIM:]
    assert jnp.allclose(mean, ref_mean, atol=1e-4), "mean mismatch"
    assert jnp.allclose(logstd, ref_logstd, atol=1e-4), "logstd mismatch"
    assert mean.shape == (B, ACTION_DIM) and logstd.shape == (B, ACTION_DIM)

    print("KERNEL_OK")
</pallas_src>

<mosaic_0001>
module attributes {stable_mosaic.version = 11 : i64} {
  func.func @policy_kernel(%arg0: i32, %arg1: memref<8x126xf32, #tpu.memory_space<vmem>>, %arg2: memref<8x12xf32, #tpu.memory_space<vmem>>, %arg3: memref<126x32xf32, #tpu.memory_space<vmem>>, %arg4: memref<12x32xf32, #tpu.memory_space<vmem>>, %arg5: memref<1x32xf32, #tpu.memory_space<vmem>>, %arg6: memref<32x32xf32, #tpu.memory_space<vmem>>, %arg7: memref<1x32xf32, #tpu.memory_space<vmem>>, %arg8: memref<32x24xf32, #tpu.memory_space<vmem>>, %arg9: memref<1x24xf32, #tpu.memory_space<vmem>>, %arg10: memref<8x24xf32, #tpu.memory_space<vmem>>) attributes {dimension_semantics = [#tpu.dimension_semantics<parallel>], iteration_bounds = array<i64: 1>, scalar_prefetch = 0 : i64, scratch_operands = 0 : i64, tpu.core_type = #tpu.core_type<tc>, window_params = [{transform_indices = @transform_0, window_bounds = array<i64: 8, 126>}, {transform_indices = @transform_1, window_bounds = array<i64: 8, 12>}, {pipeline_mode = #tpu.pipeline_mode<synchronous>, transform_indices = @transform_2, window_bounds = array<i64: 126, 32>}, {pipeline_mode = #tpu.pipeline_mode<synchronous>, transform_indices = @transform_3, window_bounds = array<i64: 12, 32>}, {pipeline_mode = #tpu.pipeline_mode<synchronous>, transform_indices = @transform_4, window_bounds = array<i64: 1, 32>}, {pipeline_mode = #tpu.pipeline_mode<synchronous>, transform_indices = @transform_5, window_bounds = array<i64: 32, 32>}, {pipeline_mode = #tpu.pipeline_mode<synchronous>, transform_indices = @transform_6, window_bounds = array<i64: 1, 32>}, {pipeline_mode = #tpu.pipeline_mode<synchronous>, transform_indices = @transform_7, window_bounds = array<i64: 32, 24>}, {pipeline_mode = #tpu.pipeline_mode<synchronous>, transform_indices = @transform_8, window_bounds = array<i64: 1, 24>}, {transform_indices = @transform_9, window_bounds = array<i64: 8, 24>}]} {
    %c0 = arith.constant 0 : index
    %c0_0 = arith.constant 0 : index
    %0 = vector.load %arg1[%c0, %c0_0] : memref<8x126xf32, #tpu.memory_space<vmem>>, vector<8x126xf32>
    %c0_1 = arith.constant 0 : index
    %c0_2 = arith.constant 0 : index
    %1 = vector.load %arg3[%c0_1, %c0_2] : memref<126x32xf32, #tpu.memory_space<vmem>>, vector<126x32xf32>
    %cst = arith.constant dense<0.000000e+00> : vector<8x32xf32>
    %2 = tpu.matmul %0, %1, %cst {dimension_numbers = #tpu.dot_dimension_numbers<[1], [0], [0], [1], [0, 0, 1, 1], [], []>} : vector<8x126xf32>, vector<126x32xf32>, vector<8x32xf32> -> vector<8x32xf32>
    %c0_3 = arith.constant 0 : index
    %c0_4 = arith.constant 0 : index
    %3 = vector.load %arg2[%c0_3, %c0_4] : memref<8x12xf32, #tpu.memory_space<vmem>>, vector<8x12xf32>
    %c0_5 = arith.constant 0 : index
    %c0_6 = arith.constant 0 : index
    %4 = vector.load %arg4[%c0_5, %c0_6] : memref<12x32xf32, #tpu.memory_space<vmem>>, vector<12x32xf32>
    %cst_7 = arith.constant dense<0.000000e+00> : vector<8x32xf32>
    %5 = tpu.matmul %3, %4, %cst_7 {dimension_numbers = #tpu.dot_dimension_numbers<[1], [0], [0], [1], [0, 0, 1, 1], [], []>} : vector<8x12xf32>, vector<12x32xf32>, vector<8x32xf32> -> vector<8x32xf32>
    %6 = arith.addf %2, %5 : vector<8x32xf32>
    %c0_8 = arith.constant 0 : index
    %c0_9 = arith.constant 0 : index
    %7 = vector.load %arg5[%c0_8, %c0_9] : memref<1x32xf32, #tpu.memory_space<vmem>>, vector<1x32xf32>
    %8 = vector.broadcast %7 : vector<1x32xf32> to vector<8x32xf32>
    %9 = arith.addf %6, %8 : vector<8x32xf32>
    %cst_10 = arith.constant 0.000000e+00 : f32
    %10 = vector.broadcast %cst_10 : f32 to vector<8x32xf32>
    %11 = arith.maximumf %9, %10 : vector<8x32xf32>
    %c0_11 = arith.constant 0 : index
    %c0_12 = arith.constant 0 : index
    %12 = vector.load %arg6[%c0_11, %c0_12] : memref<32x32xf32, #tpu.memory_space<vmem>>, vector<32x32xf32>
    %cst_13 = arith.constant dense<0.000000e+00> : vector<8x32xf32>
    %13 = tpu.matmul %11, %12, %cst_13 {dimension_numbers = #tpu.dot_dimension_numbers<[1], [0], [0], [1], [0, 0, 1, 1], [], []>} : vector<8x32xf32>, vector<32x32xf32>, vector<8x32xf32> -> vector<8x32xf32>
    %c0_14 = arith.constant 0 : index
    %c0_15 = arith.constant 0 : index
    %14 = vector.load %arg7[%c0_14, %c0_15] : memref<1x32xf32, #tpu.memory_space<vmem>>, vector<1x32xf32>
    %15 = vector.broadcast %14 : vector<1x32xf32> to vector<8x32xf32>
    %16 = arith.addf %13, %15 : vector<8x32xf32>
    %cst_16 = arith.constant 0.000000e+00 : f32
    %17 = vector.broadcast %cst_16 : f32 to vector<8x32xf32>
    %18 = arith.maximumf %16, %17 : vector<8x32xf32>
    %c0_17 = arith.constant 0 : index
    %c0_18 = arith.constant 0 : index
    %19 = vector.load %arg8[%c0_17, %c0_18] : memref<32x24xf32, #tpu.memory_space<vmem>>, vector<32x24xf32>
    %cst_19 = arith.constant dense<0.000000e+00> : vector<8x24xf32>
    %20 = tpu.matmul %18, %19, %cst_19 {dimension_numbers = #tpu.dot_dimension_numbers<[1], [0], [0], [1], [0, 0, 1, 1], [], []>} : vector<8x32xf32>, vector<32x24xf32>, vector<8x24xf32> -> vector<8x24xf32>
    %c0_20 = arith.constant 0 : index
    %c0_21 = arith.constant 0 : index
    %21 = vector.load %arg9[%c0_20, %c0_21] : memref<1x24xf32, #tpu.memory_space<vmem>>, vector<1x24xf32>
    %22 = vector.broadcast %21 : vector<1x24xf32> to vector<8x24xf32>
    %23 = arith.addf %20, %22 : vector<8x24xf32>
    %c0_22 = arith.constant 0 : index
    %c0_23 = arith.constant 0 : index
    %24 = vector.load %arg10[%c0_22, %c0_23] : memref<8x24xf32, #tpu.memory_space<vmem>>, vector<8x24xf32>
    tpu.vector_store %arg10[%c0_22, %c0_23], %23 {strides = array<i32>} : memref<8x24xf32, #tpu.memory_space<vmem>>, vector<8x24xf32>,
    return
  }
  func.func @transform_0(%arg0: i32) -> (i32, i32) {
    %c0_i32 = arith.constant 0 : i32
    %c0_i32_0 = arith.constant 0 : i32
    return %arg0, %c0_i32 : i32, i32
  }
  func.func @transform_1(%arg0: i32) -> (i32, i32) {
    %c0_i32 = arith.constant 0 : i32
    %c0_i32_0 = arith.constant 0 : i32
    return %arg0, %c0_i32 : i32, i32
  }
  func.func @transform_2(%arg0: i32) -> (i32, i32) {
    %c0_i32 = arith.constant 0 : i32
    %c0_i32_0 = arith.constant 0 : i32
    %c0_i32_1 = arith.constant 0 : i32
    return %c0_i32, %c0_i32_0 : i32, i32
  }
  func.func @transform_3(%arg0: i32) -> (i32, i32) {
    %c0_i32 = arith.constant 0 : i32
    %c0_i32_0 = arith.constant 0 : i32
    %c0_i32_1 = arith.constant 0 : i32
    return %c0_i32, %c0_i32_0 : i32, i32
  }
  func.func @transform_4(%arg0: i32) -> (i32, i32) {
    %c0_i32 = arith.constant 0 : i32
    %c0_i32_0 = arith.constant 0 : i32
    %c0_i32_1 = arith.constant 0 : i32
    return %c0_i32, %c0_i32_0 : i32, i32
  }
  func.func @transform_5(%arg0: i32) -> (i32, i32) {
    %c0_i32 = arith.constant 0 : i32
    %c0_i32_0 = arith.constant 0 : i32
    %c0_i32_1 = arith.constant 0 : i32
    return %c0_i32, %c0_i32_0 : i32, i32
  }
  func.func @transform_6(%arg0: i32) -> (i32, i32) {
    %c0_i32 = arith.constant 0 : i32
    %c0_i32_0 = arith.constant 0 : i32
    %c0_i32_1 = arith.constant 0 : i32
    return %c0_i32, %c0_i32_0 : i32, i32
  }
  func.func @transform_7(%arg0: i32) -> (i32, i32) {
    %c0_i32 = arith.constant 0 : i32
    %c0_i32_0 = arith.constant 0 : i32
    %c0_i32_1 = arith.constant 0 : i32
    return %c0_i32, %c0_i32_0 : i32, i32
  }
  func.func @transform_8(%arg0: i32) -> (i32, i32) {
    %c0_i32 = arith.constant 0 : i32
    %c0_i32_0 = arith.constant 0 : i32
    %c0_i32_1 = arith.constant 0 : i32
    return %c0_i32, %c0_i32_0 : i32, i32
  }
  func.func @transform_9(%arg0: i32) -> (i32, i32) {
    %c0_i32 = arith.constant 0 : i32
    %c0_i32_0 = arith.constant 0 : i32
    return %arg0, %c0_i32 : i32, i32
  }
}

</mosaic_0001>

<llo_original>
// kernel: policy_forward.1
$region0: #{policy_forward.1}
  #allocation0 [shape = 'u32[]', space=smem, size = 0x4, offset = 0x4, fixed_abs, tag = 'smem constant byte address 0x4 - core index']
  #allocation1 [shape = 'u32[144,128]{1,0:T(1,128)}', space=vmem, size = 0x12000, scoped, tag = 'internal scratch']
  %s0 = inlined_call_operand.vmem [shape: f32[8,126], index: 0, kind: input, shape index: {}]
  %s1 = inlined_call_operand.vmem [shape: f32[8,12], index: 1, kind: input, shape index: {}]
  %s2 = inlined_call_operand.vmem [shape: f32[126,32], index: 2, kind: input, shape index: {}]
  %s3 = inlined_call_operand.vmem [shape: f32[12,32], index: 3, kind: input, shape index: {}]
  %s4 = inlined_call_operand.vmem [shape: f32[1,32], index: 4, kind: input, shape index: {}]
  %s5 = inlined_call_operand.vmem [shape: f32[32,32], index: 5, kind: input, shape index: {}]
  %s6 = inlined_call_operand.vmem [shape: f32[1,32], index: 6, kind: input, shape index: {}]
  %s7 = inlined_call_operand.vmem [shape: f32[32,24], index: 7, kind: input, shape index: {}]
  %s8 = inlined_call_operand.vmem [shape: f32[1,24], index: 8, kind: input, shape index: {}]
  %s9 = inlined_call_operand.vmem [shape: f32[8,24], index: 9, kind: output, shape index: {}]
  %s10 = sld [smem:[#allocation0]]
  $region46: #{policy_forward.1} parent=0
    _
  %s12 = ssub.s32 1, %s10
  %s13 = scalar_select 0, %s12, %s10
  // Predicated region
  $region2: #{policy_forward.1} parent=0 // pred_check
    _
  $region3: #{policy_forward.1} parent=0 // pred_check_branch
    %15 = sbr.rel (0) target = $region5
  $region4: #{policy_forward.1} parent=0 // pred_region
    _
  $region5: #{policy_forward.1} parent=0 // pred_fallthru
    _
  // Predicated region
  $region6: #{policy_forward.1} parent=0 // pred_check
    _
  $region7: #{policy_forward.1} parent=0 // pred_check_branch
    %17 = sbr.rel (0) target = $region9
  $region8: #{policy_forward.1} parent=0 // pred_region
    _
  $region9: #{policy_forward.1} parent=0 // pred_fallthru
    _
  // Predicated region
  $region10: #{policy_forward.1} parent=0 // pred_check
    _
  $region11: #{policy_forward.1} parent=0 // pred_check_branch
    %19 = sbr.rel (0) target = $region13
  $region12: #{policy_forward.1} parent=0 // pred_region
    _
  $region13: #{policy_forward.1} parent=0 // pred_fallthru
    _
  // Predicated region
  $region14: #{policy_forward.1} parent=0 // pred_check
    _
  $region15: #{policy_forward.1} parent=0 // pred_check_branch
    %21 = sbr.rel (0) target = $region17
  $region16: #{policy_forward.1} parent=0 // pred_region
    _
  $region17: #{policy_forward.1} parent=0 // pred_fallthru
    _
  // Predicated region
  $region18: #{policy_forward.1} parent=0 // pred_check
    _
  $region19: #{policy_forward.1} parent=0 // pred_check_branch
    %23 = sbr.rel (0) target = $region21
  $region20: #{policy_forward.1} parent=0 // pred_region
    _
  $region21: #{policy_forward.1} parent=0 // pred_fallthru
    _
  // Predicated region
  $region22: #{policy_forward.1} parent=0 // pred_check
    _
  $region23: #{policy_forward.1} parent=0 // pred_check_branch
    %25 = sbr.rel (0) target = $region25
  $region24: #{policy_forward.1} parent=0 // pred_region
    _
  $region25: #{policy_forward.1} parent=0 // pred_fallthru
    _
  // Predicated region
  $region26: #{policy_forward.1} parent=0 // pred_check
    _
  $region27: #{policy_forward.1} parent=0 // pred_check_branch
    %27 = sbr.rel (0) target = $region29
  $region28: #{policy_forward.1} parent=0 // pred_region
    _
  $region29: #{policy_forward.1} parent=0 // pred_fallthru
    _
  // Predicated region
  $region30: #{policy_forward.1} parent=0 // pred_check
    _
  $region31: #{policy_forward.1} parent=0 // pred_check_branch
    %29 = sbr.rel (0) target = $region33
  $region32: #{policy_forward.1} parent=0 // pred_region
    _
  $region33: #{policy_forward.1} parent=0 // pred_fallthru
    _
  // Predicated region
  $region34: #{policy_forward.1} parent=0 // pred_check
    _
  $region35: #{policy_forward.1} parent=0 // pred_check_branch
    %31 = sbr.rel (0) target = $region37
  $region36: #{policy_forward.1} parent=0 // pred_region
    _
  $region37: #{policy_forward.1} parent=0 // pred_fallthru
    _
  %v32 = vld [vmem:[%s0] sm:$0xff]
  %v33 = vld [vmem:[%s2] sm:$0xff]
  %v34 = vld [vmem:[%s2 + $0x8] sm:$0xff]
  %v35 = vld [vmem:[%s2 + $0x10] sm:$0xff]
  %v36 = vld [vmem:[%s2 + $0x18] sm:$0xff]
  %v37 = vld [vmem:[%s2 + $0x20] sm:$0xff]
  %v38 = vld [vmem:[%s2 + $0x28] sm:$0xff]
  %v39 = vld [vmem:[%s2 + $0x30] sm:$0xff]
  %v40 = vld [vmem:[%s2 + $0x38] sm:$0xff]
  %v41 = vld [vmem:[%s2 + $0x40] sm:$0xff]
  %v42 = vld [vmem:[%s2 + $0x48] sm:$0xff]
  %v43 = vld [vmem:[%s2 + $0x50] sm:$0xff]
  %v44 = vld [vmem:[%s2 + $0x58] sm:$0xff]
  %v45 = vld [vmem:[%s2 + $0x60] sm:$0xff]
  %v46 = vld [vmem:[%s2 + $0x68] sm:$0xff]
  %v47 = vld [vmem:[%s2 + $0x70] sm:$0xff]
  %v48 = vld [vmem:[%s2 + $0x78] sm:$0x3f]
  %v49 = vld [vmem:[%s1] sm:$0xff]
  %v50 = vld [vmem:[%s3] sm:$0xff]
  %v51 = vld [vmem:[%s3 + $0x8] sm:$0xf]
  %vm52 = vcmask 97280
  %v54 = vsel %vm52, %v49, 0
  %vm56 = vcmask 1043456
  %v58 = vsel %vm56, %v51, 0
  %60 = vmatprep.subr.mxu0 0.0
  %61 = vmatpush1.msra.mxu0 0.0
  %62 = vmatprep.subr.mxu0 0.0
  %63 = vmatpush1.msra.mxu0 0.0
  %64 = vmatprep.subr.mxu0 0.0
  %65 = vmatpush1.msra.mxu0 0.0
  %66 = vmatprep.subr.mxu0 0.0
  %67 = vmatpush1.msra.mxu0 0.0
  %68 = vmatprep.subr.mxu0 0.0
  %69 = vmatpush1.msra.mxu0 0.0
  %70 = vmatprep.subr.mxu0 0.0
  %71 = vmatpush1.msra.mxu0 0.0
  %72 = vmatprep.subr.mxu0 0.0
  %73 = vmatpush1.msra.mxu0 0.0
  %74 = vmatprep.subr.mxu0 0.0
  %75 = vmatpush1.msra.mxu0 0.0
  %76 = vmatprep.subr.mxu0 0.0
  %77 = vmatpush1.msra.mxu0 0.0
  %78 = vmatprep.subr.mxu0 0.0
  %79 = vmatpush1.msra.mxu0 0.0
  %80 = vmatprep.subr.mxu0 0.0
  %81 = vmatpush1.msra.mxu0 0.0
  %82 = vmatprep.subr.mxu0 0.0
  %83 = vmatpush1.msra.mxu0 0.0
  %84 = vmatprep.subr.mxu0 0.0
  %85 = vmatpush1.msra.mxu0 0.0
  %86 = vmatprep.subr.mxu0 0.0
  %87 = vmatpush1.msra.mxu0 0.0
  %88 = vmatprep.subr.mxu0 0.0
  %89 = vmatpush1.msra.mxu0 %v58
  %90 = vmatprep.subr.mxu0 0.0
  %91 = vmatpush1.msra.mxu0 %v50
  %92 = vmatprep.subr.mxu0 0.0
  %93 = vmatpush2.msra.mxu0 0.0
  %94 = vmatprep.subr.mxu0 0.0
  %95 = vmatpush2.msra.mxu0 0.0
  %96 = vmatprep.subr.mxu0 0.0
  %97 = vmatpush2.msra.mxu0 0.0
  %98 = vmatprep.subr.mxu0 0.0
  %99 = vmatpush2.msra.mxu0 0.0
  %100 = vmatprep.subr.mxu0 0.0
  %101 = vmatpush2.msra.mxu0 0.0
  %102 = vmatprep.subr.mxu0 0.0
  %103 = vmatpush2.msra.mxu0 0.0
  %104 = vmatprep.subr.mxu0 0.0
  %105 = vmatpush2.msra.mxu0 0.0
  %106 = vmatprep.subr.mxu0 0.0
  %107 = vmatpush2.msra.mxu0 0.0
  %108 = vmatprep.subr.mxu0 0.0
  %109 = vmatpush2.msra.mxu0 0.0
  %110 = vmatprep.subr.mxu0 0.0
  %111 = vmatpush2.msra.mxu0 0.0
  %112 = vmatprep.subr.mxu0 0.0
  %113 = vmatpush2.msra.mxu0 0.0
  %114 = vmatprep.subr.mxu0 0.0
  %115 = vmatpush2.msra.mxu0 0.0
  %116 = vmatprep.subr.mxu0 0.0
  %117 = vmatpush2.msra.mxu0 0.0
  %118 = vmatprep.subr.mxu0 0.0
  %119 = vmatpush2.msra.mxu0 0.0
  %120 = vmatprep.subr.mxu0 0.0
  %121 = vmatpush2.msra.mxu0 0.0
  %122 = vmatprep.subr.mxu0 0.0
  %123 = vmatpush2.msra.mxu0 0.0
  %124 = vmatprep.mubr.f32.mxu0 0.0
  %125 = vmatmul.mubr.f32.gmra.mxu0 %v54
  %v126 = vpop.f32.mrf.mxu0
  %v127 = vadd.f32 0.0, %v126
  %v128 = vpop.f32.mrf.mxu0
  %129 = vdwg.mxu0
  %vm130 = vcmask 1031168
  %v132 = vsel %vm130, %v32, 0
  %vm134 = vcmask 1045504
  %v136 = vsel %vm134, %v48, 0
  %138 = vmatprep.subr.mxu0 0.0
  %139 = vmatpush1.msra.mxu0 %v136
  %140 = vmatprep.subr.mxu0 0.0
  %141 = vmatpush1.msra.mxu0 %v47
  %142 = vmatprep.subr.mxu0 0.0
  %143 = vmatpush1.msra.mxu0 %v46
  %144 = vmatprep.subr.mxu0 0.0
  %145 = vmatpush1.msra.mxu0 %v45
  %146 = vmatprep.subr.mxu0 0.0
  %147 = vmatpush1.msra.mxu0 %v44
  %148 = vmatprep.subr.mxu0 0.0
  %149 = vmatpush1.msra.mxu0 %v43
  %150 = vmatprep.subr.mxu0 0.0
  %151 = vmatpush1.msra.mxu0 %v42
  %152 = vmatprep.subr.mxu0 0.0
  %153 = vmatpush1.msra.mxu0 %v41
  %154 = vmatprep.subr.mxu0 0.0
  %155 = vmatpush1.msra.mxu0 %v40
  %156 = vmatprep.subr.mxu0 0.0
  %157 = vmatpush1.msra.mxu0 %v39
  %158 = vmatprep.subr.mxu0 0.0
  %159 = vmatpush1.msra.mxu0 %v38
  %160 = vmatprep.subr.mxu0 0.0
  %161 = vmatpush1.msra.mxu0 %v37
  %162 = vmatprep.subr.mxu0 0.0
  %163 = vmatpush1.msra.mxu0 %v36
  %164 = vmatprep.subr.mxu0 0.0
  %165 = vmatpush1.msra.mxu0 %v35
  %166 = vmatprep.subr.mxu0 0.0
  %167 = vmatpush1.msra.mxu0 %v34
  %168 = vmatprep.subr.mxu0 0.0
  %169 = vmatpush1.msra.mxu0 %v33
  %170 = vmatprep.subr.mxu0 0.0
  %171 = vmatpush2.msra.mxu0 0.0
  %172 = vmatprep.subr.mxu0 0.0
  %173 = vmatpush2.msra.mxu0 0.0
  %174 = vmatprep.subr.mxu0 0.0
  %175 = vmatpush2.msra.mxu0 0.0
  %176 = vmatprep.subr.mxu0 0.0
  %177 = vmatpush2.msra.mxu0 0.0
  %178 = vmatprep.subr.mxu0 0.0
  %179 = vmatpush2.msra.mxu0 0.0
  %180 = vmatprep.subr.mxu0 0.0
  %181 = vmatpush2.msra.mxu0 0.0
  %182 = vmatprep.subr.mxu0 0.0
  %183 = vmatpush2.msra.mxu0 0.0
  %184 = vmatprep.subr.mxu0 0.0
  %185 = vmatpush2.msra.mxu0 0.0
  %186 = vmatprep.subr.mxu0 0.0
  %187 = vmatpush2.msra.mxu0 0.0
  %188 = vmatprep.subr.mxu0 0.0
  %189 = vmatpush2.msra.mxu0 0.0
  %190 = vmatprep.subr.mxu0 0.0
  %191 = vmatpush2.msra.mxu0 0.0
  %192 = vmatprep.subr.mxu0 0.0
  %193 = vmatpush2.msra.mxu0 0.0
  %194 = vmatprep.subr.mxu0 0.0
  %195 = vmatpush2.msra.mxu0 0.0
  %196 = vmatprep.subr.mxu0 0.0
  %197 = vmatpush2.msra.mxu0 0.0
  %198 = vmatprep.subr.mxu0 0.0
  %199 = vmatpush2.msra.mxu0 0.0
  %200 = vmatprep.subr.mxu0 0.0
  %201 = vmatpush2.msra.mxu0 0.0
  %202 = vmatprep.mubr.f32.mxu0 0.0
  %203 = vmatmul.mubr.f32.gmra.mxu0 %v132
  %v204 = vpop.f32.mrf.mxu0
  %v205 = vadd.f32 %v127, %v204
  %v206 = vpop.f32.mrf.mxu0
  %207 = vdwg.mxu0
  %v208 = vld [vmem:[%s4] sm:$0x1]
  %v210 = vlaneseq
  %v211 = vshrl.u32 %v210, 7
  %v212 = vsub.s32 0, %v211
  %v213 = vrot.slane %v208, %v212
  %v215 = vadd.f32 %v205, %v213
  %v216 = vmax.f32 %v215, 0.0
  %v217 = vld [vmem:[%s5] sm:$0xff]
  %v218 = vld [vmem:[%s5 + $0x8] sm:$0xff]
  %v219 = vld [vmem:[%s5 + $0x10] sm:$0xff]
  %v220 = vld [vmem:[%s5 + $0x18] sm:$0xff]
  %v221 = vld [vmem:[%s6] sm:$0x1]
  %v223 = vlaneseq
  %v224 = vshrl.u32 %v223, 7
  %v225 = vsub.s32 0, %v224
  %v226 = vrot.slane %v221, %v225
  %vm228 = vcmask 261120
  %v230 = vsel %vm228, %v216, 0
  %232 = vmatprep.subr.mxu0 0.0
  %233 = vmatpush1.msra.mxu0 0.0
  %234 = vmatprep.subr.mxu0 0.0
  %235 = vmatpush1.msra.mxu0 0.0
  %236 = vmatprep.subr.mxu0 0.0
  %237 = vmatpush1.msra.mxu0 0.0
  %238 = vmatprep.subr.mxu0 0.0
  %239 = vmatpush1.msra.mxu0 0.0
  %240 = vmatprep.subr.mxu0 0.0
  %241 = vmatpush1.msra.mxu0 0.0
  %242 = vmatprep.subr.mxu0 0.0
  %243 = vmatpush1.msra.mxu0 0.0
  %244 = vmatprep.subr.mxu0 0.0
  %245 = vmatpush1.msra.mxu0 0.0
  %246 = vmatprep.subr.mxu0 0.0
  %247 = vmatpush1.msra.mxu0 0.0
  %248 = vmatprep.subr.mxu0 0.0
  %249 = vmatpush1.msra.mxu0 0.0
  %250 = vmatprep.subr.mxu0 0.0
  %251 = vmatpush1.msra.mxu0 0.0
  %252 = vmatprep.subr.mxu0 0.0
  %253 = vmatpush1.msra.mxu0 0.0
  %254 = vmatprep.subr.mxu0 0.0
  %255 = vmatpush1.msra.mxu0 0.0
  %256 = vmatprep.subr.mxu0 0.0
  %257 = vmatpush1.msra.mxu0 %v220
  %258 = vmatprep.subr.mxu0 0.0
  %259 = vmatpush1.msra.mxu0 %v219
  %260 = vmatprep.subr.mxu0 0.0
  %261 = vmatpush1.msra.mxu0 %v218
  %262 = vmatprep.subr.mxu0 0.0
  %263 = vmatpush1.msra.mxu0 %v217
  %264 = vmatprep.subr.mxu0 0.0
  %265 = vmatpush2.msra.mxu0 0.0
  %266 = vmatprep.subr.mxu0 0.0
  %267 = vmatpush2.msra.mxu0 0.0
  %268 = vmatprep.subr.mxu0 0.0
  %269 = vmatpush2.msra.mxu0 0.0
  %270 = vmatprep.subr.mxu0 0.0
  %271 = vmatpush2.msra.mxu0 0.0
  %272 = vmatprep.subr.mxu0 0.0
  %273 = vmatpush2.msra.mxu0 0.0
  %274 = vmatprep.subr.mxu0 0.0
  %275 = vmatpush2.msra.mxu0 0.0
  %276 = vmatprep.subr.mxu0 0.0
  %277 = vmatpush2.msra.mxu0 0.0
  %278 = vmatprep.subr.mxu0 0.0
  %279 = vmatpush2.msra.mxu0 0.0
  %280 = vmatprep.subr.mxu0 0.0
  %281 = vmatpush2.msra.mxu0 0.0
  %282 = vmatprep.subr.mxu0 0.0
  %283 = vmatpush2.msra.mxu0 0.0
  %284 = vmatprep.subr.mxu0 0.0
  %285 = vmatpush2.msra.mxu0 0.0
  %286 = vmatprep.subr.mxu0 0.0
  %287 = vmatpush2.msra.mxu0 0.0
  %288 = vmatprep.subr.mxu0 0.0
  %289 = vmatpush2.msra.mxu0 0.0
  %290 = vmatprep.subr.mxu0 0.0
  %291 = vmatpush2.msra.mxu0 0.0
  %292 = vmatprep.subr.mxu0 0.0
  %293 = vmatpush2.msra.mxu0 0.0
  %294 = vmatprep.subr.mxu0 0.0
  %295 = vmatpush2.msra.mxu0 0.0
  %296 = vmatprep.mubr.f32.mxu0 0.0
  %297 = vmatmul.mubr.f32.gmra.mxu0 %v230
  %v298 = vpop.f32.mrf.mxu0
  %v299 = vadd.f32 %v226, %v298
  %v300 = vpop.f32.mrf.mxu0
  %301 = vdwg.mxu0
  %v302 = vmax.f32 %v299, 0.0
  %v303 = vld [vmem:[%s7] sm:$0xff]
  %v304 = vld [vmem:[%s7 + $0x8] sm:$0xff]
  %v305 = vld [vmem:[%s7 + $0x10] sm:$0xff]
  %v306 = vld [vmem:[%s7 + $0x18] sm:$0xff]
  %v307 = vld [vmem:[%s8] sm:$0x1]
  %v309 = vlaneseq
  %v310 = vshrl.u32 %v309, 7
  %v311 = vsub.s32 0, %v310
  %v312 = vrot.slane %v307, %v311
  %v315 = vsel %vm228, %v302, 0
  %317 = vmatprep.subr.mxu0 0.0
  %318 = vmatpush1.msra.mxu0 0.0
  %319 = vmatprep.subr.mxu0 0.0
  %320 = vmatpush1.msra.mxu0 0.0
  %321 = vmatprep.subr.mxu0 0.0
  %322 = vmatpush1.msra.mxu0 0.0
  %323 = vmatprep.subr.mxu0 0.0
  %324 = vmatpush1.msra.mxu0 0.0
  %325 = vmatprep.subr.mxu0 0.0
  %326 = vmatpush1.msra.mxu0 0.0
  %327 = vmatprep.subr.mxu0 0.0
  %328 = vmatpush1.msra.mxu0 0.0
  %329 = vmatprep.subr.mxu0 0.0
  %330 = vmatpush1.msra.mxu0 0.0
  %331 = vmatprep.subr.mxu0 0.0
  %332 = vmatpush1.msra.mxu0 0.0
  %333 = vmatprep.subr.mxu0 0.0
  %334 = vmatpush1.msra.mxu0 0.0
  %335 = vmatprep.subr.mxu0 0.0
  %336 = vmatpush1.msra.mxu0 0.0
  %337 = vmatprep.subr.mxu0 0.0
  %338 = vmatpush1.msra.mxu0 0.0
  %339 = vmatprep.subr.mxu0 0.0
  %340 = vmatpush1.msra.mxu0 0.0
  %341 = vmatprep.subr.mxu0 0.0
  %342 = vmatpush1.msra.mxu0 %v306
  %343 = vmatprep.subr.mxu0 0.0
  %344 = vmatpush1.msra.mxu0 %v305
  %345 = vmatprep.subr.mxu0 0.0
  %346 = vmatpush1.msra.mxu0 %v304
  %347 = vmatprep.subr.mxu0 0.0
  %348 = vmatpush1.msra.mxu0 %v303
  %349 = vmatprep.subr.mxu0 0.0
  %350 = vmatpush2.msra.mxu0 0.0
  %351 = vmatprep.subr.mxu0 0.0
  %352 = vmatpush2.msra.mxu0 0.0
  %353 = vmatprep.subr.mxu0 0.0
  %354 = vmatpush2.msra.mxu0 0.0
  %355 = vmatprep.subr.mxu0 0.0
  %356 = vmatpush2.msra.mxu0 0.0
  %357 = vmatprep.subr.mxu0 0.0
  %358 = vmatpush2.msra.mxu0 0.0
  %359 = vmatprep.subr.mxu0 0.0
  %360 = vmatpush2.msra.mxu0 0.0
  %361 = vmatprep.subr.mxu0 0.0
  %362 = vmatpush2.msra.mxu0 0.0
  %363 = vmatprep.subr.mxu0 0.0
  %364 = vmatpush2.msra.mxu0 0.0
  %365 = vmatprep.subr.mxu0 0.0
  %366 = vmatpush2.msra.mxu0 0.0
  %367 = vmatprep.subr.mxu0 0.0
  %368 = vmatpush2.msra.mxu0 0.0
  %369 = vmatprep.subr.mxu0 0.0
  %370 = vmatpush2.msra.mxu0 0.0
  %371 = vmatprep.subr.mxu0 0.0
  %372 = vmatpush2.msra.mxu0 0.0
  %373 = vmatprep.subr.mxu0 0.0
  %374 = vmatpush2.msra.mxu0 0.0
  %375 = vmatprep.subr.mxu0 0.0
  %376 = vmatpush2.msra.mxu0 0.0
  %377 = vmatprep.subr.mxu0 0.0
  %378 = vmatpush2.msra.mxu0 0.0
  %379 = vmatprep.subr.mxu0 0.0
  %380 = vmatpush2.msra.mxu0 0.0
  %381 = vmatprep.mubr.f32.mxu0 0.0
  %382 = vmatmul.mubr.f32.gmra.mxu0 %v315
  %v383 = vpop.f32.mrf.mxu0
  %v384 = vadd.f32 %v312, %v383
  %v385 = vpop.f32.mrf.mxu0
  %386 = vdwg.mxu0
  %vm387 = vcmask 195584
  %388 = vst.msk [vmem:[%s9] sm:$0xff] %vm387, %v384
  // Predicated region
  $region38: #{policy_forward.1} parent=0 // pred_check
    _
  $region39: #{policy_forward.1} parent=0 // pred_check_branch
    %390 = sbr.rel (0) target = $region41
  $region40: #{policy_forward.1} parent=0 // pred_region
    _
  $region41: #{policy_forward.1} parent=0 // pred_fallthru
    _
  // Predicated region
  $region42: #{policy_forward.1} parent=0 // pred_check
    _
  $region43: #{policy_forward.1} parent=0 // pred_check_branch
    %392 = sbr.rel (0) target = $region45
  $region44: #{policy_forward.1} parent=0 // pred_region
    _
  $region45: #{policy_forward.1} parent=0 // pred_fallthru
    _

</llo_original>
